<compile_context>
chip_gen: v5e
topology: v5e:2x2
jax: 0.10.0
libtpu: 0.0.40
codegen_flags: <defaults>
</compile_context>

<pallas_src>
import jax
import jax.numpy as jnp
from jax.experimental import pallas as pl
from jax.experimental.pallas import tpu as pltpu


def _round_up(n: int, m: int) -> int:
    return ((n + m - 1) // m) * m


def _choose_batch_tile(batch: int, d: int) -> int:
    """Rows of x processed per grid step.

    - Always a multiple of 8 (sublane granule); a multiple of 128 whenever the
      grid has more than one step, so every lane-dense output block is an
      unmasked store.
    - Sized so the double-buffered (TB, D) f32 x tile stays within ~8 MiB,
      which fits comfortably under the scoped-VMEM defaults on every
      generation (v5e: 16 MiB, v6e/v7x: 32 MiB).
    """
    d_lanes = max(_round_up(d, 128), 128)           # lane-padded row width in VMEM
    vmem_rows = (8 << 20) // (2 * d_lanes * 4)      # rows fitting the 8 MiB budget
    cap = max(8, min(4096, (vmem_rows // 8) * 8))
    if batch <= cap:
        return _round_up(batch, 8)                  # single grid step covers the batch
    return max(128, (cap // 128) * 128)             # multi-step: keep output lane-dense


def _rowdot_kernel(x_ref, w_ref, b_ref, o_ref):
    """y[i] = sum_d x[i, d] * w[d] + b   — VPU multiply + XLU lane reduce, no MXU.

    x_ref : (TB, D)     input tile in its native dtype (in-kernel cast == x.float())
    w_ref : (1, D)      f32 weight row, VMEM-resident across the grid
    b_ref : (1,)        f32 bias scalar in SMEM
    o_ref : (1, 1, TB)  f32 lane-dense output slab (batch on the lane axis)
    """
    x = x_ref[...].astype(jnp.float32)      # no extra HBM read/write for the cast
    w = w_ref[...]                          # (1, D) broadcasts over the TB rows
    row = jnp.sum(x * w, axis=-1)           # (TB,) cross-lane reduce -> XLU slot
    o_ref[...] = (row + b_ref[0]).reshape(1, 1, o_ref.shape[-1])


def linear_forward(x, weight, bias):
    """y = x.float() @ weight.T + bias for out_features == 1, as a Pallas TPU kernel.

    x      : (B, D) any float/int dtype (cast in-kernel, mirroring x.float())
    weight : (1, D) f32
    bias   : (1,)   f32
    returns: (B, 1) f32
    """
    B, D = x.shape
    assert weight.shape == (1, D)
    assert bias.shape == (1,)

    tb = _choose_batch_tile(B, D)
    grid = -(-B // tb)  # ceil-div; ragged last block handled by Pallas (no jnp.pad pass)

    out = pl.pallas_call(
        _rowdot_kernel,
        out_shape=jax.ShapeDtypeStruct((grid, 1, tb), jnp.float32),
        grid=(grid,),
        in_specs=[
            pl.BlockSpec((tb, D), lambda i: (i, 0)),             # x tile, pipelined over batch
            pl.BlockSpec((1, D), lambda i: (0, 0)),              # weight row stays VMEM-resident
            pl.BlockSpec(memory_space=pltpu.MemorySpace.SMEM),   # bias as SMEM scalar
        ],
        out_specs=pl.BlockSpec((1, 1, tb), lambda i: (i, 0, 0)),  # lane-dense output slab
        compiler_params=pltpu.CompilerParams(
            dimension_semantics=("parallel",),                    # megacore-shard the batch loop
        ),
    )(x, weight, bias)

    # (grid, 1, tb) slab -> (B, 1), dropping any ragged-tail lanes.
    return out.reshape(grid * tb)[:B].reshape(B, 1)


class PredictorPallas:
    """JAX/Pallas equivalent of the PyTorch Predictor module.

    forward(x) -> LinearModel(input_size) applied to x.float().
    """

    def __init__(self, input_size: int, seed: int = 0):
        key = jax.random.PRNGKey(seed)
        kw, kb = jax.random.split(key)
        bound = 1.0 / float(input_size) ** 0.5
        # nn.Linear-style uniform(-1/sqrt(D), 1/sqrt(D)) init (not bit-matched to torch).
        self.weight = jax.random.uniform(kw, (1, input_size), jnp.float32, -bound, bound)
        self.bias = jax.random.uniform(kb, (1,), jnp.float32, -bound, bound)
        # TODO(synk): bounds/mean/std come from config.json in the original module but
        # are never used inside forward(); kept as placeholders only.
        self.bounds = None
        self._mean = 0.0
        self._std = 1.0

    def __call__(self, x):
        return linear_forward(x, self.weight, self.bias)


if __name__ == "__main__":
    input_size = 32
    predictor = PredictorPallas(input_size=input_size, seed=0)

    # Primary check: small, tile-aligned batch.
    batch = 8
    x = jax.random.normal(jax.random.PRNGKey(0), (batch, input_size), jnp.float32)
    out = jax.block_until_ready(predictor(x))
    ref = x.astype(jnp.float32) @ predictor.weight.T + predictor.bias
    assert out.shape == (batch, 1)
    assert jnp.allclose(out, ref, atol=1e-5, rtol=1e-5)

    # Secondary check: ragged batch (exercises partial-block handling, no padding pass).
    batch2 = 50
    x2 = jax.random.normal(jax.random.PRNGKey(1), (batch2, input_size), jnp.float32)
    out2 = jax.block_until_ready(predictor(x2))
    ref2 = x2.astype(jnp.float32) @ predictor.weight.T + predictor.bias
    assert out2.shape == (batch2, 1)
    assert jnp.allclose(out2, ref2, atol=1e-5, rtol=1e-5)

    print("KERNEL_OK")
</pallas_src>

<mosaic_0001>
module attributes {stable_mosaic.version = 11 : i64} {
  func.func @_rowdot_kernel(%arg0: i32, %arg1: memref<8x32xf32, #tpu.memory_space<vmem>>, %arg2: memref<1x32xf32, #tpu.memory_space<vmem>>, %arg3: memref<1xf32, #tpu.memory_space<smem>>, %arg4: memref<1x1x8xf32, #tpu.memory_space<vmem>>) attributes {dimension_semantics = [#tpu.dimension_semantics<parallel>], iteration_bounds = array<i64: 1>, scalar_prefetch = 0 : i64, scratch_operands = 0 : i64, tpu.core_type = #tpu.core_type<tc>, window_params = [{transform_indices = @transform_0, window_bounds = array<i64: 8, 32>}, {pipeline_mode = #tpu.pipeline_mode<synchronous>, transform_indices = @transform_1, window_bounds = array<i64: 1, 32>}, {transform_indices = @transform_2, window_bounds = array<i64: 1>}, {transform_indices = @transform_3, window_bounds = array<i64: 1, 1, 8>}]} {
    %c0 = arith.constant 0 : index
    %c0_0 = arith.constant 0 : index
    %0 = vector.load %arg1[%c0, %c0_0] : memref<8x32xf32, #tpu.memory_space<vmem>>, vector<8x32xf32>
    %c0_1 = arith.constant 0 : index
    %c0_2 = arith.constant 0 : index
    %1 = vector.load %arg2[%c0_1, %c0_2] : memref<1x32xf32, #tpu.memory_space<vmem>>, vector<1x32xf32>
    %2 = vector.broadcast %1 : vector<1x32xf32> to vector<8x32xf32>
    %3 = arith.mulf %0, %2 : vector<8x32xf32>
    %cst = arith.constant dense<0.000000e+00> : vector<8xf32>
    %4 = vector.multi_reduction <add>, %3, %cst [1] : vector<8x32xf32> to vector<8xf32>
    %c0_3 = arith.constant 0 : index
    %5 = memref.load %arg3[%c0_3] : memref<1xf32, #tpu.memory_space<smem>>
    %6 = vector.broadcast %5 : f32 to vector<8xf32>
    %7 = arith.addf %4, %6 : vector<8xf32>
    %8 = vector.shape_cast %7 : vector<8xf32> to vector<1x1x8xf32>
    %c0_4 = arith.constant 0 : index
    %c0_5 = arith.constant 0 : index
    %c0_6 = arith.constant 0 : index
    %9 = vector.load %arg4[%c0_4, %c0_5, %c0_6] : memref<1x1x8xf32, #tpu.memory_space<vmem>>, vector<1x1x8xf32>
    tpu.vector_store %arg4[%c0_4, %c0_5, %c0_6], %8 {strides = array<i32>} : memref<1x1x8xf32, #tpu.memory_space<vmem>>, vector<1x1x8xf32>,
    return
  }
  func.func @transform_0(%arg0: i32) -> (i32, i32) {
    %c0_i32 = arith.constant 0 : i32
    %c0_i32_0 = arith.constant 0 : i32
    return %arg0, %c0_i32 : i32, i32
  }
  func.func @transform_1(%arg0: i32) -> (i32, i32) {
    %c0_i32 = arith.constant 0 : i32
    %c0_i32_0 = arith.constant 0 : i32
    %c0_i32_1 = arith.constant 0 : i32
    return %c0_i32, %c0_i32_0 : i32, i32
  }
  func.func @transform_2(%arg0: i32) -> i32 {
    %c0_i32 = arith.constant 0 : i32
    %c0_i32_0 = arith.constant 0 : i32
    return %c0_i32 : i32
  }
  func.func @transform_3(%arg0: i32) -> (i32, i32, i32) {
    %c0_i32 = arith.constant 0 : i32
    %c0_i32_0 = arith.constant 0 : i32
    %c0_i32_1 = arith.constant 0 : i32
    return %arg0, %c0_i32, %c0_i32_0 : i32, i32, i32
  }
}

</mosaic_0001>

<llo_original>
// kernel: tpu_custom_call.1
$region0: #{tpu_custom_call.1}
  #allocation0 [shape = 'u32[]', space=smem, size = 0x4, offset = 0x4, fixed_abs, tag = 'smem constant byte address 0x4 - core index']
  #allocation1 [shape = 'u32[72,128]{1,0:T(1,128)}', space=vmem, size = 0x9000, scoped, tag = 'internal scratch']
  #allocation2 [shape = 'f32[1]{0:T(128)S(6)}', space=smem, size = 0x200, scoped, tag = 'scoped memory for tpu_custom_call.1']
  %s0 = inlined_call_operand.hbm [shape: f32[8,32], index: 0, kind: input, shape index: {}]
  %s1 = inlined_call_operand.vmem [shape: f32[1,32], index: 1, kind: input, shape index: {}]
  %s2 = inlined_call_operand.<no memory space> [shape: f32[1], index: 2, kind: input, shape index: {}]
  %s3 = inlined_call_operand.hbm [shape: f32[1,1,8], index: 3, kind: output, shape index: {}]
  %s4 = sld [smem:[#allocation0]]
  $region26: #{tpu_custom_call.1} parent=0
    _
  %s6 = ssub.s32 1, %s4
  %s7 = scalar_select 0, %s6, %s4
  %8 = sst [smem:[#allocation2]] %s2
  $region1: #{tpu_custom_call.1} parent=0
    #allocation3 [shape = 'u8[4096]{0}', space=vmem, size = 0x1000, scoped, tag = 'input window, operand 0, single buffered']
    #allocation4 [shape = 's32[1]{0}', space=sflag, size = 0x4, scoped, tag = 'scoped memory for tpu_custom_call.1']
    #allocation5 [shape = 's32[1]{0}', space=sflag, size = 0x4, scoped, tag = 'scoped memory for tpu_custom_call.1']
    #allocation6 [shape = 'u8[512]{0}', space=vmem, size = 0x400, scoped, tag = 'output window, operand 0, single buffered']
    %9 = vsyncpa [#allocation4], 0
    %10 = vsyncpa [#allocation5], 0
    // Predicated region
    $region2: #{tpu_custom_call.1} parent=1 // pred_check
      _
    $region3: #{tpu_custom_call.1} parent=1 // pred_check_branch
      %12 = sbr.rel (0) target = $region5
    $region4: #{tpu_custom_call.1} parent=1 // pred_region
      %14 = vsyncadd [#allocation4], 0
      %s16 = sshll.u32 %s0, 4
      %s17 = int_to_ptr.hbm [resolvable:$true] %s16
      %s18 = sshll.u32 [#allocation3], 4
      %s19 = int_to_ptr.vmem [resolvable:$true] %s18
      %21 = dma.hbm_to_vmem [thread:$0]  %s17, 128, %s19, [#allocation4]
    $region5: #{tpu_custom_call.1} parent=1 // pred_fallthru
      _
    // Predicated region
    $region6: #{tpu_custom_call.1} parent=1 // pred_check
      _
    $region7: #{tpu_custom_call.1} parent=1 // pred_check_branch
      %23 = sbr.rel (0) target = $region9
    $region8: #{tpu_custom_call.1} parent=1 // pred_region
      _
    $region9: #{tpu_custom_call.1} parent=1 // pred_fallthru
      _
    // Predicated region
    $region10: #{tpu_custom_call.1} parent=1 // pred_check
      _
    $region11: #{tpu_custom_call.1} parent=1 // pred_check_branch
      %25 = sbr.rel (0) target = $region13
    $region12: #{tpu_custom_call.1} parent=1 // pred_region
      _
    $region13: #{tpu_custom_call.1} parent=1 // pred_fallthru
      _
    // Predicated region
    $region14: #{tpu_custom_call.1} parent=1 // pred_check
      _
    $region15: #{tpu_custom_call.1} parent=1 // pred_check_branch
      %27 = sbr.rel (0) target = $region17
    $region16: #{tpu_custom_call.1} parent=1 // pred_region
      %29 = dma.done [#allocation4], 128
    $region17: #{tpu_custom_call.1} parent=1 // pred_fallthru
      _
    %v30 = vld [vmem:[#allocation3] sm:$0xff]
    %v31 = vld [vmem:[%s1] sm:$0x1]
    %v33 = vperm.slane %v31, 0
    %v35 = vmul.f32 %v30, %v33
    %vm36 = vcmask 261120
    %v37 = vsel %vm36, %v35, 0.0
    %38 = vadd.xlane.f32.xlu0 %v37
    %v39 = vpop.xlane.xlu0 %38
    %s40 = sld [smem:[#allocation2]]
    %v41 = vstv %s40
    %v42 = vadd.f32 %v39, %v41
    %v44 = vlaneseq
    %v45 = vand.u32 %v44, 127
    %v46 = vperm.slane %v42, %v45
    %vm48 = vcmask 57344
    %49 = vst.msk [vmem:[#allocation6] sm:$0x1] %vm48, %v46
    // Predicated region
    $region18: #{tpu_custom_call.1} parent=1 // pred_check
      _
    $region19: #{tpu_custom_call.1} parent=1 // pred_check_branch
      %51 = sbr.rel (0) target = $region21
    $region20: #{tpu_custom_call.1} parent=1 // pred_region
      %53 = vsyncadd [#allocation5], 0
      %s55 = sshll.u32 [#allocation6], 4
      %s56 = int_to_ptr.vmem [resolvable:$true] %s55
      %s57 = sshll.u32 %s3, 4
      %s58 = int_to_ptr.hbm [resolvable:$true] %s57
      %60 = dma.vmem_to_hbm [thread:$0]  %s56, 16, %s58, [#allocation5]
    $region21: #{tpu_custom_call.1} parent=1 // pred_fallthru
      _
    // Predicated region
    $region22: #{tpu_custom_call.1} parent=1 // pred_check
      _
    $region23: #{tpu_custom_call.1} parent=1 // pred_check_branch
      %62 = sbr.rel (0) target = $region25
    $region24: #{tpu_custom_call.1} parent=1 // pred_region
      %64 = dma.done [#allocation5], 16
    $region25: #{tpu_custom_call.1} parent=1 // pred_fallthru
      _
    %65 = vsyncpa [#allocation4], 1
    %66 = vsyncpa [#allocation5], 1

</llo_original>
